<compile_context>
chip_gen: v7x
topology: tpu7x:2x2x1
jax: 0.10.0
libtpu: 0.0.40
codegen_flags: <defaults>
</compile_context>

<pallas_src>
import functools

import jax
import jax.numpy as jnp
from jax.experimental import pallas as pl
from jax.experimental.pallas import tpu as pltpu

# ----- model hyper-parameters (small, consistent with the module) -----
ALPHABET = 4
SEQ = 8
INPUT = ALPHABET * SEQ          # 32
HIDDEN = 64
LATENT = 2
BATCH = 2
LANES = 128                     # lane-dense slab width for inputs and output

# ----- packed-parameter slab layout (rows of a (P_ROWS, 128) f32 array) -----
W_ENC_R0 = 0                     # (INPUT,  HIDDEN)  rows   0..31,  lanes 0..63
W_MULV_R0 = 32                   # (HIDDEN, 2*LAT)   rows  32..95,  lanes 0..3
WD2_R0 = 96                      # (HIDDEN, INPUT)   rows  96..159, lanes 0..31
WD1_R0 = 160                     # (LATENT, HIDDEN)  rows 160..161, lanes 0..63
B_ENC_R = 162                    # (1, HIDDEN)
B_MULV_R = 163                   # (1, 2*LATENT)
BD1_R = 164                      # (1, HIDDEN)
BD2_R = 165                      # (1, INPUT)
P_ROWS = 168                     # padded to a multiple of 8 sublanes


def vae_fused_kernel(act_ref, p_ref, out_ref):
    B = act_ref.shape[0]

    # ---- unpack the single activation slab: lanes [0:32]=x, [32:34]=eps ----
    x = act_ref[:, 0:INPUT]                                   # (B, 32)
    eps = act_ref[:, INPUT:INPUT + LATENT]                    # (B, 2)

    # ---- static views into the single packed parameter slab ----
    w_enc = p_ref[W_ENC_R0:W_ENC_R0 + INPUT, 0:HIDDEN]        # (32, 64)
    b_enc = p_ref[B_ENC_R:B_ENC_R + 1, 0:HIDDEN]              # (1, 64)
    w_mulv = p_ref[W_MULV_R0:W_MULV_R0 + HIDDEN, 0:2 * LATENT]  # (64, 4)
    b_mulv = p_ref[B_MULV_R:B_MULV_R + 1, 0:2 * LATENT]       # (1, 4)
    wd1 = p_ref[WD1_R0:WD1_R0 + LATENT, 0:HIDDEN]             # (2, 64)
    bd1 = p_ref[BD1_R:BD1_R + 1, 0:HIDDEN]                    # (1, 64)
    wd2 = p_ref[WD2_R0:WD2_R0 + HIDDEN, 0:INPUT]              # (64, 32)
    bd2 = p_ref[BD2_R:BD2_R + 1, 0:INPUT]                     # (1, 32)

    # ---- encoder: Linear(INPUT -> HIDDEN) + ReLU (MXU) ----
    h = jnp.dot(x, w_enc, preferred_element_type=jnp.float32) + b_enc
    h = jnp.maximum(h, 0.0)

    # ---- fused fc21 | fc22: one (HIDDEN, 2*LATENT) matmul, then slice ----
    mulv = jnp.dot(h, w_mulv, preferred_element_type=jnp.float32) + b_mulv
    mu = mulv[:, :LATENT]                                     # (B, 2)
    logvar = mulv[:, LATENT:2 * LATENT]                       # (B, 2)

    # ---- reparameterize: z = mu + eps * exp(0.5 * logvar) ----
    z = mu + eps * jnp.exp(0.5 * logvar)

    # ---- decoder layer 1 (K = LATENT = 2): two VPU FMAs, no MXU pass ----
    h2 = (z[:, 0:1] * wd1[0:1, :]
          + z[:, 1:2] * wd1[1:2, :]
          + bd1)
    h2 = jnp.maximum(h2, 0.0)

    # ---- decoder layer 2: Linear(HIDDEN -> INPUT) (MXU) ----
    logits = jnp.dot(h2, wd2, preferred_element_type=jnp.float32) + bd2  # (B,32)

    # ---- fused log_softmax over the alphabet axis of the flat logits ----
    # flat layout: lanes [a*SEQ : (a+1)*SEQ] hold alphabet symbol a.
    # Register-resident slice tree + jnp.tile broadcast; feeds a single store.
    sl = [logits[:, a * SEQ:(a + 1) * SEQ] for a in range(ALPHABET)]   # 4x(B,SEQ)
    m = sl[0]
    for s in sl[1:]:
        m = jnp.maximum(m, s)
    denom = jnp.exp(sl[0] - m)
    for s in sl[1:]:
        denom = denom + jnp.exp(s - m)
    lse = m + jnp.log(denom)                                  # (B, SEQ)
    logp = logits - jnp.tile(lse, (1, ALPHABET))              # (B, 32)

    # ---- single full-width unmasked 128-lane store ----
    pad = jnp.zeros((B, LANES - INPUT - 2 * LATENT), jnp.float32)
    out_ref[...] = jnp.concatenate([logp, mu, logvar, pad], axis=1)


def make_params(key):
    """Deterministic parameter init (torch nn.Linear-style uniform). Weights
    are stored already transposed as (in, out) so the kernel does x @ W + b;
    fc21/fc22 are pre-fused into a single (HIDDEN, 2*LATENT) weight/bias."""
    ks = jax.random.split(key, 10)

    def lin(kw, kb, fan_in, fan_out):
        bound = 1.0 / jnp.sqrt(fan_in)
        w = jax.random.uniform(kw, (fan_in, fan_out), jnp.float32, -bound, bound)
        b = jax.random.uniform(kb, (1, fan_out), jnp.float32, -bound, bound)
        return w, b

    w_enc, b_enc = lin(ks[0], ks[1], INPUT, HIDDEN)
    w21, b21 = lin(ks[2], ks[3], HIDDEN, LATENT)
    w22, b22 = lin(ks[4], ks[5], HIDDEN, LATENT)
    w_mulv = jnp.concatenate([w21, w22], axis=1)              # (HIDDEN, 2*LATENT)
    b_mulv = jnp.concatenate([b21, b22], axis=1)              # (1, 2*LATENT)
    wd1, bd1 = lin(ks[6], ks[7], LATENT, HIDDEN)              # (LATENT, HIDDEN)
    wd2, bd2 = lin(ks[8], ks[9], HIDDEN, INPUT)
    return (w_enc, b_enc, w_mulv, b_mulv, wd1, bd1, wd2, bd2)


def pack_params(params):
    """Pack all parameters into ONE lane-dense (P_ROWS, 128) f32 slab so the
    kernel needs a single weight DMA. Done once at init."""
    w_enc, b_enc, w_mulv, b_mulv, wd1, bd1, wd2, bd2 = params
    slab = jnp.zeros((P_ROWS, LANES), jnp.float32)
    slab = slab.at[W_ENC_R0:W_ENC_R0 + INPUT, 0:HIDDEN].set(w_enc)
    slab = slab.at[W_MULV_R0:W_MULV_R0 + HIDDEN, 0:2 * LATENT].set(w_mulv)
    slab = slab.at[WD2_R0:WD2_R0 + HIDDEN, 0:INPUT].set(wd2)
    slab = slab.at[WD1_R0:WD1_R0 + LATENT, 0:HIDDEN].set(wd1)
    slab = slab.at[B_ENC_R:B_ENC_R + 1, 0:HIDDEN].set(b_enc)
    slab = slab.at[B_MULV_R:B_MULV_R + 1, 0:2 * LATENT].set(b_mulv)
    slab = slab.at[BD1_R:BD1_R + 1, 0:HIDDEN].set(bd1)
    slab = slab.at[BD2_R:BD2_R + 1, 0:INPUT].set(bd2)
    return slab


@functools.partial(jax.jit, static_argnames=("rep",))
def vae_forward(x, noise, param_slab, rep=True):
    """x: (B, alphabet, seq) f32; noise: (B, latent) f32 (eps ~ N(0,1), passed
    explicitly since Pallas kernels are stateless w.r.t. torch.randn_like).
    Returns (x_hat log-probs over alphabet, mu, logvar)."""
    B = x.shape[0]
    x_flat = x.reshape(B, INPUT)                              # row-major == torch .view
    eps = noise if rep else jnp.zeros_like(noise)             # mu-only path

    # Pack activations into one (BP, 128) slab (single prologue DMA); pad the
    # batch up to a multiple of 8 so every vreg / store is a full (8,128) tile.
    BP = max(8, ((B + 7) // 8) * 8)
    act = jnp.zeros((BP, LANES), jnp.float32)
    act = act.at[:B, 0:INPUT].set(x_flat)
    act = act.at[:B, INPUT:INPUT + LATENT].set(eps)

    vmem = pl.BlockSpec(memory_space=pltpu.MemorySpace.VMEM)

    # Gridless, everything VMEM-resident: total working set is ~100 KB, far
    # below the scoped VMEM limit on v5e/v6e/v7x. If the real batch grows to
    # >=16, add a 1-D batch grid (8-row blocks) with
    # dimension_semantics=("parallel",) to shard across v7x's 2 TensorCores.
    packed = pl.pallas_call(
        vae_fused_kernel,
        out_shape=jax.ShapeDtypeStruct((BP, LANES), jnp.float32),
        in_specs=[vmem, vmem],
        out_specs=vmem,
    )(act, param_slab)

    x_hat = packed[:B, :INPUT].reshape(B, ALPHABET, SEQ)
    mu = packed[:B, INPUT:INPUT + LATENT]
    logvar = packed[:B, INPUT + LATENT:INPUT + 2 * LATENT]
    return x_hat, mu, logvar


def vae_reference(x, noise, params, rep=True):
    """Pure-JAX reference for correctness checking (uses the raw params)."""
    w_enc, b_enc, w_mulv, b_mulv, wd1, bd1, wd2, bd2 = params
    B = x.shape[0]
    xf = x.reshape(B, INPUT)
    h = jnp.maximum(xf @ w_enc + b_enc, 0.0)
    mulv = h @ w_mulv + b_mulv
    mu, logvar = mulv[:, :LATENT], mulv[:, LATENT:2 * LATENT]
    z = mu + (noise if rep else jnp.zeros_like(noise)) * jnp.exp(0.5 * logvar)
    h2 = jnp.maximum(z @ wd1 + bd1, 0.0)
    logits = (h2 @ wd2 + bd2).reshape(B, ALPHABET, SEQ)
    return jax.nn.log_softmax(logits, axis=1), mu, logvar


if __name__ == "__main__":
    key = jax.random.PRNGKey(0)
    k_param, k_x, k_eps = jax.random.split(key, 3)

    params = make_params(k_param)
    param_slab = pack_params(params)
    x = jax.random.uniform(k_x, (BATCH, ALPHABET, SEQ), jnp.float32)
    eps = jax.random.normal(k_eps, (BATCH, LATENT), jnp.float32)

    for rep in (True, False):
        x_hat, mu, logvar = vae_forward(x, eps, param_slab, rep=rep)
        jax.block_until_ready((x_hat, mu, logvar))

        assert x_hat.shape == (BATCH, ALPHABET, SEQ)
        assert mu.shape == (BATCH, LATENT) and logvar.shape == (BATCH, LATENT)
        # log_softmax sanity: probs over alphabet sum to 1
        assert jnp.allclose(jnp.exp(x_hat).sum(axis=1), 1.0, atol=1e-5)

        # check against pure-JAX reference
        r_xh, r_mu, r_lv = vae_reference(x, eps, params, rep=rep)
        assert jnp.allclose(x_hat, r_xh, atol=1e-5, rtol=1e-5)
        assert jnp.allclose(mu, r_mu, atol=1e-5, rtol=1e-5)
        assert jnp.allclose(logvar, r_lv, atol=1e-5, rtol=1e-5)

    print("KERNEL_OK")
</pallas_src>

<mosaic_0001>
module attributes {stable_mosaic.version = 11 : i64} {
  func.func @vae_fused_kernel(%arg0: memref<8x128xf32, #tpu.memory_space<vmem>>, %arg1: memref<168x128xf32, #tpu.memory_space<vmem>>, %arg2: memref<8x128xf32, #tpu.memory_space<vmem>>) attributes {dimension_semantics = [], scalar_prefetch = 0 : i64, scratch_operands = 0 : i64, tpu.core_type = #tpu.core_type<tc>} {
    %c0 = arith.constant 0 : index
    %c0_0 = arith.constant 0 : index
    %0 = vector.load %arg0[%c0, %c0_0] : memref<8x128xf32, #tpu.memory_space<vmem>>, vector<8x32xf32>
    %c0_1 = arith.constant 0 : index
    %c32 = arith.constant 32 : index
    %1 = vector.load %arg0[%c0_1, %c32] : memref<8x128xf32, #tpu.memory_space<vmem>>, vector<8x2xf32>
    %c0_2 = arith.constant 0 : index
    %c0_3 = arith.constant 0 : index
    %2 = vector.load %arg1[%c0_2, %c0_3] : memref<168x128xf32, #tpu.memory_space<vmem>>, vector<32x64xf32>
    %c162 = arith.constant 162 : index
    %c0_4 = arith.constant 0 : index
    %3 = vector.load %arg1[%c162, %c0_4] : memref<168x128xf32, #tpu.memory_space<vmem>>, vector<1x64xf32>
    %c32_5 = arith.constant 32 : index
    %c0_6 = arith.constant 0 : index
    %4 = vector.load %arg1[%c32_5, %c0_6] : memref<168x128xf32, #tpu.memory_space<vmem>>, vector<64x4xf32>
    %c163 = arith.constant 163 : index
    %c0_7 = arith.constant 0 : index
    %5 = vector.load %arg1[%c163, %c0_7] : memref<168x128xf32, #tpu.memory_space<vmem>>, vector<1x4xf32>
    %c160 = arith.constant 160 : index
    %c0_8 = arith.constant 0 : index
    %6 = vector.load %arg1[%c160, %c0_8] : memref<168x128xf32, #tpu.memory_space<vmem>>, vector<2x64xf32>
    %c164 = arith.constant 164 : index
    %c0_9 = arith.constant 0 : index
    %7 = vector.load %arg1[%c164, %c0_9] : memref<168x128xf32, #tpu.memory_space<vmem>>, vector<1x64xf32>
    %c96 = arith.constant 96 : index
    %c0_10 = arith.constant 0 : index
    %8 = vector.load %arg1[%c96, %c0_10] : memref<168x128xf32, #tpu.memory_space<vmem>>, vector<64x32xf32>
    %c165 = arith.constant 165 : index
    %c0_11 = arith.constant 0 : index
    %9 = vector.load %arg1[%c165, %c0_11] : memref<168x128xf32, #tpu.memory_space<vmem>>, vector<1x32xf32>
    %cst = arith.constant dense<0.000000e+00> : vector<8x64xf32>
    %10 = tpu.matmul %0, %2, %cst {dimension_numbers = #tpu.dot_dimension_numbers<[1], [0], [0], [1], [0, 0, 1, 1], [], []>} : vector<8x32xf32>, vector<32x64xf32>, vector<8x64xf32> -> vector<8x64xf32>
    %11 = vector.broadcast %3 : vector<1x64xf32> to vector<8x64xf32>
    %12 = arith.addf %10, %11 : vector<8x64xf32>
    %cst_12 = arith.constant 0.000000e+00 : f32
    %13 = vector.broadcast %cst_12 : f32 to vector<8x64xf32>
    %14 = arith.maximumf %12, %13 : vector<8x64xf32>
    %cst_13 = arith.constant dense<0.000000e+00> : vector<8x4xf32>
    %15 = tpu.matmul %14, %4, %cst_13 {dimension_numbers = #tpu.dot_dimension_numbers<[1], [0], [0], [1], [0, 0, 1, 1], [], []>} : vector<8x64xf32>, vector<64x4xf32>, vector<8x4xf32> -> vector<8x4xf32>
    %16 = vector.broadcast %5 : vector<1x4xf32> to vector<8x4xf32>
    %17 = arith.addf %15, %16 : vector<8x4xf32>
    %18 = vector.extract_strided_slice %17 {offsets = [0, 0], sizes = [8, 2], strides = [1, 1]} : vector<8x4xf32> to vector<8x2xf32>
    %19 = vector.extract_strided_slice %17 {offsets = [0, 2], sizes = [8, 2], strides = [1, 1]} : vector<8x4xf32> to vector<8x2xf32>
    %cst_14 = arith.constant 5.000000e-01 : f32
    %20 = vector.broadcast %cst_14 : f32 to vector<8x2xf32>
    %21 = arith.mulf %20, %19 : vector<8x2xf32>
    %22 = math.exp %21 : vector<8x2xf32>
    %23 = arith.mulf %1, %22 : vector<8x2xf32>
    %24 = arith.addf %18, %23 : vector<8x2xf32>
    %25 = vector.extract_strided_slice %24 {offsets = [0, 0], sizes = [8, 1], strides = [1, 1]} : vector<8x2xf32> to vector<8x1xf32>
    %26 = vector.extract_strided_slice %6 {offsets = [0, 0], sizes = [1, 64], strides = [1, 1]} : vector<2x64xf32> to vector<1x64xf32>
    %27 = vector.broadcast %25 : vector<8x1xf32> to vector<8x64xf32>
    %28 = vector.broadcast %26 : vector<1x64xf32> to vector<8x64xf32>
    %29 = arith.mulf %27, %28 : vector<8x64xf32>
    %30 = vector.extract_strided_slice %24 {offsets = [0, 1], sizes = [8, 1], strides = [1, 1]} : vector<8x2xf32> to vector<8x1xf32>
    %31 = vector.extract_strided_slice %6 {offsets = [1, 0], sizes = [1, 64], strides = [1, 1]} : vector<2x64xf32> to vector<1x64xf32>
    %32 = vector.broadcast %30 : vector<8x1xf32> to vector<8x64xf32>
    %33 = vector.broadcast %31 : vector<1x64xf32> to vector<8x64xf32>
    %34 = arith.mulf %32, %33 : vector<8x64xf32>
    %35 = arith.addf %29, %34 : vector<8x64xf32>
    %36 = vector.broadcast %7 : vector<1x64xf32> to vector<8x64xf32>
    %37 = arith.addf %35, %36 : vector<8x64xf32>
    %cst_15 = arith.constant 0.000000e+00 : f32
    %38 = vector.broadcast %cst_15 : f32 to vector<8x64xf32>
    %39 = arith.maximumf %37, %38 : vector<8x64xf32>
    %cst_16 = arith.constant dense<0.000000e+00> : vector<8x32xf32>
    %40 = tpu.matmul %39, %8, %cst_16 {dimension_numbers = #tpu.dot_dimension_numbers<[1], [0], [0], [1], [0, 0, 1, 1], [], []>} : vector<8x64xf32>, vector<64x32xf32>, vector<8x32xf32> -> vector<8x32xf32>
    %41 = vector.broadcast %9 : vector<1x32xf32> to vector<8x32xf32>
    %42 = arith.addf %40, %41 : vector<8x32xf32>
    %43 = vector.extract_strided_slice %42 {offsets = [0, 0], sizes = [8, 8], strides = [1, 1]} : vector<8x32xf32> to vector<8x8xf32>
    %44 = vector.extract_strided_slice %42 {offsets = [0, 8], sizes = [8, 8], strides = [1, 1]} : vector<8x32xf32> to vector<8x8xf32>
    %45 = vector.extract_strided_slice %42 {offsets = [0, 16], sizes = [8, 8], strides = [1, 1]} : vector<8x32xf32> to vector<8x8xf32>
    %46 = vector.extract_strided_slice %42 {offsets = [0, 24], sizes = [8, 8], strides = [1, 1]} : vector<8x32xf32> to vector<8x8xf32>
    %47 = arith.maximumf %43, %44 : vector<8x8xf32>
    %48 = arith.maximumf %47, %45 : vector<8x8xf32>
    %49 = arith.maximumf %48, %46 : vector<8x8xf32>
    %50 = arith.subf %43, %49 : vector<8x8xf32>
    %51 = math.exp %50 : vector<8x8xf32>
    %52 = arith.subf %44, %49 : vector<8x8xf32>
    %53 = math.exp %52 : vector<8x8xf32>
    %54 = arith.addf %51, %53 : vector<8x8xf32>
    %55 = arith.subf %45, %49 : vector<8x8xf32>
    %56 = math.exp %55 : vector<8x8xf32>
    %57 = arith.addf %54, %56 : vector<8x8xf32>
    %58 = arith.subf %46, %49 : vector<8x8xf32>
    %59 = math.exp %58 : vector<8x8xf32>
    %60 = arith.addf %57, %59 : vector<8x8xf32>
    %61 = math.log %60 : vector<8x8xf32>
    %62 = arith.addf %49, %61 : vector<8x8xf32>
    %63 = tpu.concatenate %62, %62, %62, %62 in 1 : vector<8x8xf32>, vector<8x8xf32>, vector<8x8xf32>, vector<8x8xf32> -> vector<8x32xf32>
    %64 = arith.subf %42, %63 : vector<8x32xf32>
    %cst_17 = arith.constant 0.000000e+00 : f32
    %65 = vector.broadcast %cst_17 : f32 to vector<8x92xf32>
    %66 = tpu.concatenate %64, %18, %19, %65 in 1 : vector<8x32xf32>, vector<8x2xf32>, vector<8x2xf32>, vector<8x92xf32> -> vector<8x128xf32>
    %c0_18 = arith.constant 0 : index
    %c0_19 = arith.constant 0 : index
    %67 = vector.load %arg2[%c0_18, %c0_19] : memref<8x128xf32, #tpu.memory_space<vmem>>, vector<8x128xf32>
    tpu.vector_store %arg2[%c0_18, %c0_19], %66 {strides = array<i32>} : memref<8x128xf32, #tpu.memory_space<vmem>>, vector<8x128xf32>,
    return
  }
}

</mosaic_0001>

<llo_original>
// kernel: vae_forward.1
$region0: #{vae_forward.1}
  #allocation0 [shape = 'u32[]', space=smem, size = 0x4, offset = 0x4, fixed_abs, tag = 'smem constant byte address 0x4 - core index']
  #allocation1 [shape = 'u32[144,128]{1,0:T(1,128)}', space=vmem, size = 0x12000, scoped, tag = 'internal scratch']
  %s0 = inlined_call_operand.vmem [shape: f32[8,128], index: 0, kind: input, shape index: {}]
  %s1 = inlined_call_operand.hbm [shape: f32[168,128], index: 1, kind: input, shape index: {}]
  %s2 = inlined_call_operand.vmem [shape: f32[8,128], index: 2, kind: output, shape index: {}]
  %s3 = sld [smem:[#allocation0]]
  $region22: #{vae_forward.1} parent=0
    _
  %s5 = ssub.s32 1, %s3
  %s6 = scalar_select 0, %s5, %s3
  $region1: #{vae_forward.1} parent=0
    #allocation2 [shape = 'u8[86016]{0}', space=vmem, size = 0x15000, scoped, tag = 'input window, operand 1, single buffered']
    #allocation3 [shape = 's32[1]{0}', space=sflag, size = 0x4, scoped, tag = 'scoped memory for vae_forward.1']
    %7 = vsyncpa [#allocation3], 0
    // Predicated region
    $region2: #{vae_forward.1} parent=1 // pred_check
      _
    $region3: #{vae_forward.1} parent=1 // pred_check_branch
      %9 = sbr.rel (0) target = $region5
    $region4: #{vae_forward.1} parent=1 // pred_region
      _
    $region5: #{vae_forward.1} parent=1 // pred_fallthru
      _
    // Predicated region
    $region6: #{vae_forward.1} parent=1 // pred_check
      _
    $region7: #{vae_forward.1} parent=1 // pred_check_branch
      %11 = sbr.rel (0) target = $region9
    $region8: #{vae_forward.1} parent=1 // pred_region
      %s13 = ssub.s32 2688, 2688
      %14 = vsyncadd [#allocation3], %s13
      %s15 = sshll.u32 [#allocation2], 4
      %s16 = int_to_ptr.vmem [resolvable:$true] %s15
      %21 = dma.hbm_to_vmem [thread:$0]  %s1, 2688, %s16, [#allocation3], 128, 128, 8
    $region9: #{vae_forward.1} parent=1 // pred_fallthru
      _
    // Predicated region
    $region10: #{vae_forward.1} parent=1 // pred_check
      _
    $region11: #{vae_forward.1} parent=1 // pred_check_branch
      %23 = sbr.rel (0) target = $region13
    $region12: #{vae_forward.1} parent=1 // pred_region
      %24 = dma.done [#allocation3], 2688
    $region13: #{vae_forward.1} parent=1 // pred_fallthru
      _
    %v25 = vld [vmem:[%s0] sm:$0xff]
    %v26 = vld [vmem:[#allocation2] sm:$0xff]
    %v27 = vld [vmem:[#allocation2 + $0x8] sm:$0xff]
    %v28 = vld [vmem:[#allocation2 + $0x10] sm:$0xff]
    %v29 = vld [vmem:[#allocation2 + $0x18] sm:$0xff]
    %v30 = vld [vmem:[#allocation2 + $0xa2] sm:$0x1]
    %v31 = vld [vmem:[#allocation2 + $0x20] sm:$0xff]
    %v32 = vld [vmem:[#allocation2 + $0x28] sm:$0xff]
    %v33 = vld [vmem:[#allocation2 + $0x30] sm:$0xff]
    %v34 = vld [vmem:[#allocation2 + $0x38] sm:$0xff]
    %v35 = vld [vmem:[#allocation2 + $0x40] sm:$0xff]
    %v36 = vld [vmem:[#allocation2 + $0x48] sm:$0xff]
    %v37 = vld [vmem:[#allocation2 + $0x50] sm:$0xff]
    %v38 = vld [vmem:[#allocation2 + $0x58] sm:$0xff]
    %v39 = vld [vmem:[#allocation2 + $0xa3] sm:$0x1]
    %v40 = vld [vmem:[#allocation2 + $0xa0] sm:$0x3]
    %v41 = vld [vmem:[#allocation2 + $0xa4] sm:$0x1]
    %v42 = vld [vmem:[#allocation2 + $0x60] sm:$0xff]
    %v43 = vld [vmem:[#allocation2 + $0x68] sm:$0xff]
    %v44 = vld [vmem:[#allocation2 + $0x70] sm:$0xff]
    %v45 = vld [vmem:[#allocation2 + $0x78] sm:$0xff]
    %v46 = vld [vmem:[#allocation2 + $0x80] sm:$0xff]
    %v47 = vld [vmem:[#allocation2 + $0x88] sm:$0xff]
    %v48 = vld [vmem:[#allocation2 + $0x90] sm:$0xff]
    %v49 = vld [vmem:[#allocation2 + $0x98] sm:$0xff]
    %v50 = vld [vmem:[#allocation2 + $0xa5] sm:$0x1]
    %v51 = vlaneseq
    %v52 = vshrl.u32 %v51, 7
    %v53 = vsub.s32 0, %v52
    %v54 = vrot.slane %v30, %v53
    %vm55 = vcmask 261120
    %v57 = vsel %vm55, %v25, 0
    %59 = vmatprep.subr.mxu0 0.0
    %60 = vmatpush1.msra.mxu0 %v26
    %61 = vmatprep.subr.mxu0 0.0
    %62 = vmatpush1.msra.mxu0 %v27
    %63 = vmatprep.subr.mxu0 0.0
    %64 = vmatpush1.msra.mxu0 %v28
    %65 = vmatprep.subr.mxu0 0.0
    %66 = vmatpush1.msra.mxu0 %v29
    %67 = vmatprep.subr.mxu0 0.0
    %68 = vmatpush1.msra.mxu0 0.0
    %69 = vmatprep.subr.mxu0 0.0
    %70 = vmatpush1.msra.mxu0 0.0
    %71 = vmatprep.subr.mxu0 0.0
    %72 = vmatpush1.msra.mxu0 0.0
    %73 = vmatprep.subr.mxu0 0.0
    %74 = vmatpush1.msra.mxu0 0.0
    %75 = vmatprep.subr.mxu0 0.0
    %76 = vmatpush1.msra.mxu0 0.0
    %77 = vmatprep.subr.mxu0 0.0
    %78 = vmatpush1.msra.mxu0 0.0
    %79 = vmatprep.subr.mxu0 0.0
    %80 = vmatpush1.msra.mxu0 0.0
    %81 = vmatprep.subr.mxu0 0.0
    %82 = vmatpush1.msra.mxu0 0.0
    %83 = vmatprep.subr.mxu0 0.0
    %84 = vmatpush1.msra.mxu0 0.0
    %85 = vmatprep.subr.mxu0 0.0
    %86 = vmatpush1.msra.mxu0 0.0
    %87 = vmatprep.subr.mxu0 0.0
    %88 = vmatpush1.msra.mxu0 0.0
    %89 = vmatprep.subr.mxu0 0.0
    %90 = vmatpush1.msra.mxu0 0.0
    %91 = vmatprep.subr.mxu0 0.0
    %92 = vmatpush1.msra.mxu0 0.0
    %93 = vmatprep.subr.mxu0 0.0
    %94 = vmatpush1.msra.mxu0 0.0
    %95 = vmatprep.subr.mxu0 0.0
    %96 = vmatpush1.msra.mxu0 0.0
    %97 = vmatprep.subr.mxu0 0.0
    %98 = vmatpush1.msra.mxu0 0.0
    %99 = vmatprep.subr.mxu0 0.0
    %100 = vmatpush1.msra.mxu0 0.0
    %101 = vmatprep.subr.mxu0 0.0
    %102 = vmatpush1.msra.mxu0 0.0
    %103 = vmatprep.subr.mxu0 0.0
    %104 = vmatpush1.msra.mxu0 0.0
    %105 = vmatprep.subr.mxu0 0.0
    %106 = vmatpush1.msra.mxu0 0.0
    %107 = vmatprep.subr.mxu0 0.0
    %108 = vmatpush1.msra.mxu0 0.0
    %109 = vmatprep.subr.mxu0 0.0
    %110 = vmatpush1.msra.mxu0 0.0
    %111 = vmatprep.subr.mxu0 0.0
    %112 = vmatpush1.msra.mxu0 0.0
    %113 = vmatprep.subr.mxu0 0.0
    %114 = vmatpush1.msra.mxu0 0.0
    %115 = vmatprep.subr.mxu0 0.0
    %116 = vmatpush1.msra.mxu0 0.0
    %117 = vmatprep.subr.mxu0 0.0
    %118 = vmatpush1.msra.mxu0 0.0
    %119 = vmatprep.subr.mxu0 0.0
    %120 = vmatpush1.msra.mxu0 0.0
    %121 = vmatprep.subr.mxu0 0.0
    %122 = vmatpush1.msra.mxu0 0.0
    %123 = vmatprep.mubr.f32.mxu0 0.0
    %124 = vmatmul.mubr.f32.gmra.mrb[0].mxu0 %v57
    %v125 = vpop.f32.mrb[0].mxu0
    %v126 = vadd.f32 %v54, %v125
    %v127 = vpop.f32.mrb[0].mxu0
    %128 = vdwg.mxu0
    %v129 = vmax.f32 %v126, 0.0
    %v130 = vlaneseq
    %v131 = vshrl.u32 %v130, 7
    %v132 = vsub.s32 0, %v131
    %v133 = vrot.slane %v39, %v132
    %vm134 = vcmask 523264
    %v136 = vsel %vm134, %v129, 0
    %138 = vmatprep.subr.mxu0 0.0
    %139 = vmatpush1.msra.mxu0 %v31
    %140 = vmatprep.subr.mxu0 0.0
    %141 = vmatpush1.msra.mxu0 %v32
    %142 = vmatprep.subr.mxu0 0.0
    %143 = vmatpush1.msra.mxu0 %v33
    %144 = vmatprep.subr.mxu0 0.0
    %145 = vmatpush1.msra.mxu0 %v34
    %146 = vmatprep.subr.mxu0 0.0
    %147 = vmatpush1.msra.mxu0 %v35
    %148 = vmatprep.subr.mxu0 0.0
    %149 = vmatpush1.msra.mxu0 %v36
    %150 = vmatprep.subr.mxu0 0.0
    %151 = vmatpush1.msra.mxu0 %v37
    %152 = vmatprep.subr.mxu0 0.0
    %153 = vmatpush1.msra.mxu0 %v38
    %154 = vmatprep.subr.mxu0 0.0
    %155 = vmatpush1.msra.mxu0 0.0
    %156 = vmatprep.subr.mxu0 0.0
    %157 = vmatpush1.msra.mxu0 0.0
    %158 = vmatprep.subr.mxu0 0.0
    %159 = vmatpush1.msra.mxu0 0.0
    %160 = vmatprep.subr.mxu0 0.0
    %161 = vmatpush1.msra.mxu0 0.0
    %162 = vmatprep.subr.mxu0 0.0
    %163 = vmatpush1.msra.mxu0 0.0
    %164 = vmatprep.subr.mxu0 0.0
    %165 = vmatpush1.msra.mxu0 0.0
    %166 = vmatprep.subr.mxu0 0.0
    %167 = vmatpush1.msra.mxu0 0.0
    %168 = vmatprep.subr.mxu0 0.0
    %169 = vmatpush1.msra.mxu0 0.0
    %170 = vmatprep.subr.mxu0 0.0
    %171 = vmatpush1.msra.mxu0 0.0
    %172 = vmatprep.subr.mxu0 0.0
    %173 = vmatpush1.msra.mxu0 0.0
    %174 = vmatprep.subr.mxu0 0.0
    %175 = vmatpush1.msra.mxu0 0.0
    %176 = vmatprep.subr.mxu0 0.0
    %177 = vmatpush1.msra.mxu0 0.0
    %178 = vmatprep.subr.mxu0 0.0
    %179 = vmatpush1.msra.mxu0 0.0
    %180 = vmatprep.subr.mxu0 0.0
    %181 = vmatpush1.msra.mxu0 0.0
    %182 = vmatprep.subr.mxu0 0.0
    %183 = vmatpush1.msra.mxu0 0.0
    %184 = vmatprep.subr.mxu0 0.0
    %185 = vmatpush1.msra.mxu0 0.0
    %186 = vmatprep.subr.mxu0 0.0
    %187 = vmatpush1.msra.mxu0 0.0
    %188 = vmatprep.subr.mxu0 0.0
    %189 = vmatpush1.msra.mxu0 0.0
    %190 = vmatprep.subr.mxu0 0.0
    %191 = vmatpush1.msra.mxu0 0.0
    %192 = vmatprep.subr.mxu0 0.0
    %193 = vmatpush1.msra.mxu0 0.0
    %194 = vmatprep.subr.mxu0 0.0
    %195 = vmatpush1.msra.mxu0 0.0
    %196 = vmatprep.subr.mxu0 0.0
    %197 = vmatpush1.msra.mxu0 0.0
    %198 = vmatprep.subr.mxu0 0.0
    %199 = vmatpush1.msra.mxu0 0.0
    %200 = vmatprep.subr.mxu0 0.0
    %201 = vmatpush1.msra.mxu0 0.0
    %202 = vmatprep.mubr.f32.mxu0 0.0
    %203 = vmatmul.mubr.f32.gmra.mrb[0].mxu0 %v136
    %v204 = vpop.f32.mrb[0].mxu0
    %v205 = vadd.f32 %v133, %v204
    %v206 = vpop.f32.mrb[0].mxu0
    %207 = vdwg.mxu0
    %v208 = vmul.f32 %v205, 0.5
    %v209 = vmul.f32 %v208, 1.442695
    %v210 = vpow.pop %v209
    %212 = vrot.lane.b32.xlu0 %v210, 30
    %v213 = vpop.permute.xlu0 %212
    %v215 = vmul.f32 %v25, %v213
    %217 = vrot.lane.b32.xlu0 %v215, 96
    %v218 = vpop.permute.xlu0 %217
    %v220 = vadd.f32 %v205, %v218
    %222 = vset.pattern.permute.xlu0 0
    %223 = vperm.xlu0 %222, %v220
    %v224 = vpop.permute.xlu0 %223
    %v226 = vlaneseq
    %v227 = vshrl.u32 %v226, 7
    %v228 = vsub.s32 0, %v227
    %v229 = vrot.slane %v40, %v228
    %v230 = vmul.f32 %v224, %v229
    %231 = vset.pattern.permute.xlu0 1
    %232 = vperm.xlu0 %231, %v220
    %v233 = vpop.permute.xlu0 %232
    %v235 = vlaneseq
    %v236 = vshrl.u32 %v235, 7
    %v237 = vsub.s32 1, %v236
    %v238 = vrot.slane %v40, %v237
    %v239 = vmul.f32 %v233, %v238
    %v240 = vadd.f32 %v230, %v239
    %v241 = vlaneseq
    %v242 = vshrl.u32 %v241, 7
    %v243 = vsub.s32 0, %v242
    %v244 = vrot.slane %v41, %v243
    %v245 = vadd.f32 %v240, %v244
    %v246 = vmax.f32 %v245, 0.0
    %v247 = vlaneseq
    %v248 = vshrl.u32 %v247, 7
    %v249 = vsub.s32 0, %v248
    %v250 = vrot.slane %v50, %v249
    %v252 = vsel %vm134, %v246, 0
    %254 = vmatprep.subr.mxu0 0.0
    %255 = vmatpush1.msra.mxu0 %v42
    %256 = vmatprep.subr.mxu0 0.0
    %257 = vmatpush1.msra.mxu0 %v43
    %258 = vmatprep.subr.mxu0 0.0
    %259 = vmatpush1.msra.mxu0 %v44
    %260 = vmatprep.subr.mxu0 0.0
    %261 = vmatpush1.msra.mxu0 %v45
    %262 = vmatprep.subr.mxu0 0.0
    %263 = vmatpush1.msra.mxu0 %v46
    %264 = vmatprep.subr.mxu0 0.0
    %265 = vmatpush1.msra.mxu0 %v47
    %266 = vmatprep.subr.mxu0 0.0
    %267 = vmatpush1.msra.mxu0 %v48
    %268 = vmatprep.subr.mxu0 0.0
    %269 = vmatpush1.msra.mxu0 %v49
    %270 = vmatprep.subr.mxu0 0.0
    %271 = vmatpush1.msra.mxu0 0.0
    %272 = vmatprep.subr.mxu0 0.0
    %273 = vmatpush1.msra.mxu0 0.0
    %274 = vmatprep.subr.mxu0 0.0
    %275 = vmatpush1.msra.mxu0 0.0
    %276 = vmatprep.subr.mxu0 0.0
    %277 = vmatpush1.msra.mxu0 0.0
    %278 = vmatprep.subr.mxu0 0.0
    %279 = vmatpush1.msra.mxu0 0.0
    %280 = vmatprep.subr.mxu0 0.0
    %281 = vmatpush1.msra.mxu0 0.0
    %282 = vmatprep.subr.mxu0 0.0
    %283 = vmatpush1.msra.mxu0 0.0
    %284 = vmatprep.subr.mxu0 0.0
    %285 = vmatpush1.msra.mxu0 0.0
    %286 = vmatprep.subr.mxu0 0.0
    %287 = vmatpush1.msra.mxu0 0.0
    %288 = vmatprep.subr.mxu0 0.0
    %289 = vmatpush1.msra.mxu0 0.0
    %290 = vmatprep.subr.mxu0 0.0
    %291 = vmatpush1.msra.mxu0 0.0
    %292 = vmatprep.subr.mxu0 0.0
    %293 = vmatpush1.msra.mxu0 0.0
    %294 = vmatprep.subr.mxu0 0.0
    %295 = vmatpush1.msra.mxu0 0.0
    %296 = vmatprep.subr.mxu0 0.0
    %297 = vmatpush1.msra.mxu0 0.0
    %298 = vmatprep.subr.mxu0 0.0
    %299 = vmatpush1.msra.mxu0 0.0
    %300 = vmatprep.subr.mxu0 0.0
    %301 = vmatpush1.msra.mxu0 0.0
    %302 = vmatprep.subr.mxu0 0.0
    %303 = vmatpush1.msra.mxu0 0.0
    %304 = vmatprep.subr.mxu0 0.0
    %305 = vmatpush1.msra.mxu0 0.0
    %306 = vmatprep.subr.mxu0 0.0
    %307 = vmatpush1.msra.mxu0 0.0
    %308 = vmatprep.subr.mxu0 0.0
    %309 = vmatpush1.msra.mxu0 0.0
    %310 = vmatprep.subr.mxu0 0.0
    %311 = vmatpush1.msra.mxu0 0.0
    %312 = vmatprep.subr.mxu0 0.0
    %313 = vmatpush1.msra.mxu0 0.0
    %314 = vmatprep.subr.mxu0 0.0
    %315 = vmatpush1.msra.mxu0 0.0
    %316 = vmatprep.subr.mxu0 0.0
    %317 = vmatpush1.msra.mxu0 0.0
    %318 = vmatprep.mubr.f32.mxu0 0.0
    %319 = vmatmul.mubr.f32.gmra.mrb[0].mxu0 %v252
    %v320 = vpop.f32.mrb[0].mxu0
    %v321 = vadd.f32 %v250, %v320
    %v322 = vpop.f32.mrb[0].mxu0
    %323 = vdwg.mxu0
    %325 = vrot.lane.b32.xlu0 %v321, 120
    %v326 = vpop.permute.xlu0 %325
    %v328 = vmax.f32 %v321, %v326
    %329 = vrot.lane.b32.xlu0 %v321, 112
    %v330 = vpop.permute.xlu0 %329
    %v332 = vmax.f32 %v328, %v330
    %333 = vrot.lane.b32.xlu0 %v321, 104
    %v334 = vpop.permute.xlu0 %333
    %v336 = vmax.f32 %v332, %v334
    %v337 = vsub.f32 %v321, %v336
    %v338 = vmul.f32 %v337, 1.442695
    %v339 = vpow.pop %v338
    %341 = vrot.lane.b32.xlu0 %v336, 8
    %v342 = vpop.permute.xlu0 %341
    %v344 = vsub.f32 %v321, %v342
    %v345 = vmul.f32 %v344, 1.442695
    %v346 = vpow.pop %v345
    %348 = vrot.lane.b32.xlu0 %v346, 120
    %v349 = vpop.permute.xlu0 %348
    %v351 = vadd.f32 %v339, %v349
    %352 = vrot.lane.b32.xlu0 %v336, 16
    %v353 = vpop.permute.xlu0 %352
    %v355 = vsub.f32 %v321, %v353
    %v356 = vmul.f32 %v355, 1.442695
    %v357 = vpow.pop %v356
    %359 = vrot.lane.b32.xlu0 %v357, 112
    %v360 = vpop.permute.xlu0 %359
    %v362 = vadd.f32 %v351, %v360
    %363 = vrot.lane.b32.xlu0 %v336, 24
    %v364 = vpop.permute.xlu0 %363
    %v366 = vsub.f32 %v321, %v364
    %v367 = vmul.f32 %v366, 1.442695
    %v368 = vpow.pop %v367
    %370 = vrot.lane.b32.xlu0 %v368, 104
    %v371 = vpop.permute.xlu0 %370
    %v373 = vadd.f32 %v362, %v371
    %v374 = vlog2.pop %v373
    %v375 = vmul.f32 %v374, 0.6931472
    %v376 = vadd.f32 %v336, %v375
    %378 = vrot.lane.b32.xlu0 %v376, 8
    %v379 = vpop.permute.xlu0 %378
    %381 = vrot.lane.b32.xlu0 %v376, 16
    %v382 = vpop.permute.xlu0 %381
    %384 = vrot.lane.b32.xlu0 %v376, 24
    %v385 = vpop.permute.xlu0 %384
    %vm387 = vcmask 64512
    %v388 = vsel %vm387, %v376, %v379
    %vm389 = vcmask 130048
    %v390 = vsel %vm389, %v388, %v382
    %vm391 = vcmask 195584
    %v392 = vsel %vm391, %v390, %v385
    %v393 = vsub.f32 %v321, %v392
    %395 = vrot.lane.b32.xlu0 %v205, 32
    %v396 = vpop.permute.xlu0 %395
    %v398 = vsel %vm55, %v393, %v396
    %vm399 = vcmask 277504
    %v400 = vsel %vm399, %v398, %v396
    %vm401 = vcmask 293888
    %v402 = vsel %vm401, %v400, 0.0
    %403 = vst [vmem:[%s2] sm:$0xff] %v402
    // Predicated region
    $region14: #{vae_forward.1} parent=1 // pred_check
      _
    $region15: #{vae_forward.1} parent=1 // pred_check_branch
      %405 = sbr.rel (0) target = $region17
    $region16: #{vae_forward.1} parent=1 // pred_region
      _
    $region17: #{vae_forward.1} parent=1 // pred_fallthru
      _
    // Predicated region
    $region18: #{vae_forward.1} parent=1 // pred_check
      _
    $region19: #{vae_forward.1} parent=1 // pred_check_branch
      %407 = sbr.rel (0) target = $region21
    $region20: #{vae_forward.1} parent=1 // pred_region
      _
    $region21: #{vae_forward.1} parent=1 // pred_fallthru
      _
    %408 = vsyncpa [#allocation3], 1

</llo_original>
